<compile_context>
chip_gen: v7x
topology: tpu7x:2x2x1
jax: 0.10.0
libtpu: 0.0.40
codegen_flags: <defaults>
</compile_context>

<pallas_src>
import math

import jax
import jax.numpy as jnp
from jax.experimental import pallas as pl
from jax.experimental.pallas import tpu as pltpu


def _vmem_capacity_bytes():
    try:
        return int(pltpu.get_tpu_info().vmem_capacity_bytes)
    except Exception:
        return 64 * 1024 * 1024  # conservative default (v7x per-TensorCore VMEM)


# ------------------------------ Pallas kernels ------------------------------ #
def _make_upsample_kernel(thh, wt):
    """Fused: 1x1 conv + bias + in-kernel 2x nearest upsample of the top path.

    Block shapes seen by the kernel (thh half-res rows per band, W = 2*wt):
      x_ref : (1, C_in,  2*thh*W)   lateral rows, spatial flattened on lanes
      w_ref : (C_out, C_in)         resident 1x1 conv weight
      b_ref : (C_out, 1)            resident bias (f32)
      e_ref : (wt, W)               resident width-duplication matrix (0/1)
      t_ref : (1, C_out, thh*wt)    half-res top rows, flattened
      o_ref : (1, C_out, 2*thh*W)
    """
    w_full = 2 * wt

    def kernel(x_ref, w_ref, b_ref, e_ref, t_ref, o_ref):
        lat = jnp.dot(w_ref[...], x_ref[0], preferred_element_type=jnp.float32)
        t = t_ref[0]
        chunks = []
        for r in range(thh):  # static unroll; thh is capped small by the tiler
            wide = jnp.dot(t[:, r * wt:(r + 1) * wt], e_ref[...],
                           preferred_element_type=jnp.float32)   # (C_out, W)
            chunks.append(wide)   # full-res row 2r
            chunks.append(wide)   # full-res row 2r+1 (nearest neighbour)
        td_up = jnp.concatenate(chunks, axis=-1)                 # (C_out, 2*thh*W)
        o_ref[0] = (lat + b_ref[...] + td_up).astype(o_ref.dtype)

    return kernel


def _lateral_add_kernel(x_ref, w_ref, b_ref, t_ref, o_ref):
    """Same-resolution path: 1x1 conv + bias + add (no upsample)."""
    lat = jnp.dot(w_ref[...], x_ref[0], preferred_element_type=jnp.float32)
    o_ref[0] = (lat + b_ref[...] + t_ref[0].astype(jnp.float32)).astype(o_ref.dtype)


# ------------------------------ Tile selection ------------------------------ #
def _pick_fused_band(n, c_in, c_out, ht, wt, x_b, t_b, o_b, w_b):
    """Pick the half-res row-band height thh for the fused-upsample path.

    Lane-tiling legality: thh*wt % 128 == 0, OR thh == ht (full image rows).
    Returns (None, None) if no legal band fits the VMEM budget.
    """
    w_full = 2 * wt
    cap = _vmem_capacity_bytes()
    budget = int(cap * 0.40)  # conservative even if cap is reported per-chip on v7x
    resident = (2 * c_out * c_in * w_b      # double-buffered resident weight
                + 2 * wt * w_full * t_b     # width-expansion matrix
                + 2 * c_out * 4             # bias
                + (2 << 20))                # compiler scratch margin

    def streamed(thh):
        return 2 * (c_in * 2 * thh * w_full * x_b
                    + c_out * thh * wt * t_b
                    + c_out * 2 * thh * w_full * o_b)

    q = 128 // math.gcd(wt, 128)
    cands = set()
    if ht <= 64:                 # full-image band (also caps in-kernel unroll)
        cands.add(ht)
    t = q
    while t <= min(ht, 64):
        cands.add(t)
        t += q
    cands = sorted(cands, reverse=True)
    feasible = [c for c in cands if resident + streamed(c) <= budget]
    if not feasible:
        return None, None

    def steps(thh):
        return n * pl.cdiv(ht, thh)

    chosen = None
    for c in feasible:           # descending: largest band that keeps >=8 even steps
        if steps(c) >= 8 and steps(c) % 2 == 0:
            chosen = c
            break
    if chosen is None:
        for c in feasible:
            if steps(c) >= 4:
                chosen = c
                break
    if chosen is None:
        chosen = feasible[0]

    vmem_limit = int(max(32 << 20,
                         min(int(cap * 0.45),
                             resident + streamed(chosen) + (8 << 20))))
    return chosen, vmem_limit


def _pick_lane_tile(n, hw, c_in, c_out, x_b, t_b, o_b, w_b):
    """Pick the flattened-spatial lane tile for the same-resolution path."""
    cap = _vmem_capacity_bytes()
    budget = int(cap * 0.40)
    resident = 2 * c_out * c_in * w_b + 2 * c_out * 4 + (2 << 20)
    per_col = 2 * (c_in * x_b + c_out * t_b + c_out * o_b)
    hard_cap = 32768 if cap >= (96 << 20) else 16384   # v5e/v6e vs v7x
    tl = max(128, ((budget - resident) // per_col) // 128 * 128)
    tl = min(tl, hard_cap)
    if tl >= hw:
        tl = hw                 # full spatial extent in a single (legal) block

    def steps(t):
        return n * pl.cdiv(hw, t)

    while tl > 128 and (steps(tl) < 8 or steps(tl) % 2):
        tl = max(128, (tl // 2) // 128 * 128)

    vmem_limit = int(max(32 << 20,
                         min(int(cap * 0.45),
                             resident + per_col * tl + (8 << 20))))
    return tl, vmem_limit


# ------------------------------ pallas_call wrappers ------------------------ #
def _fused_upsample_call(x3, w_mat, b_col, t3, thh, ht, wt, out_dtype, vmem_limit):
    n, c_in, hw = x3.shape
    c_out = w_mat.shape[0]
    w_full = 2 * wt
    th = 2 * thh
    grid = (n, pl.cdiv(ht, thh))

    # Width-duplication matrix: E[k, 2k] = E[k, 2k+1] = 1 (nearest upsample).
    e_mat = (jnp.arange(wt)[:, None] == (jnp.arange(w_full)[None, :] // 2)
             ).astype(t3.dtype)

    return pl.pallas_call(
        _make_upsample_kernel(thh, wt),
        out_shape=jax.ShapeDtypeStruct((n, c_out, hw), out_dtype),
        grid_spec=pltpu.PrefetchScalarGridSpec(
            num_scalar_prefetch=0,
            grid=grid,
            in_specs=[
                pl.BlockSpec((1, c_in, th * w_full), lambda i, j: (i, 0, j)),
                pl.BlockSpec((c_out, c_in), lambda i, j: (0, 0)),
                pl.BlockSpec((c_out, 1), lambda i, j: (0, 0)),
                pl.BlockSpec((wt, w_full), lambda i, j: (0, 0)),
                pl.BlockSpec((1, c_out, thh * wt), lambda i, j: (i, 0, j)),
            ],
            out_specs=pl.BlockSpec((1, c_out, th * w_full), lambda i, j: (i, 0, j)),
        ),
        compiler_params=pltpu.CompilerParams(
            dimension_semantics=("parallel", "parallel"),
            vmem_limit_bytes=vmem_limit,
        ),
    )(x3, w_mat, b_col, e_mat, t3)


def _lateral_add_call(x3, w_mat, b_col, td3, tl, out_dtype, vmem_limit):
    n, c_in, hw = x3.shape
    c_out = w_mat.shape[0]
    grid = (n, pl.cdiv(hw, tl))
    return pl.pallas_call(
        _lateral_add_kernel,
        out_shape=jax.ShapeDtypeStruct((n, c_out, hw), out_dtype),
        grid_spec=pltpu.PrefetchScalarGridSpec(
            num_scalar_prefetch=0,
            grid=grid,
            in_specs=[
                pl.BlockSpec((1, c_in, tl), lambda i, j: (i, 0, j)),
                pl.BlockSpec((c_out, c_in), lambda i, j: (0, 0)),
                pl.BlockSpec((c_out, 1), lambda i, j: (0, 0)),
                pl.BlockSpec((1, c_out, tl), lambda i, j: (i, 0, j)),
            ],
            out_specs=pl.BlockSpec((1, c_out, tl), lambda i, j: (i, 0, j)),
        ),
        compiler_params=pltpu.CompilerParams(
            dimension_semantics=("parallel", "parallel"),
            vmem_limit_bytes=vmem_limit,
        ),
    )(x3, w_mat, b_col, td3)


# --------------------------- Module-level wrapper ---------------------------- #
def xavier_fill_params(key, dim_out, dim_in_lateral, zero_init_lateral=False):
    """Caffe2 XavierFill for a (dim_out, dim_in_lateral, 1, 1) conv weight."""
    if zero_init_lateral:
        w = jnp.zeros((dim_out, dim_in_lateral), jnp.float32)
    else:
        fan_in = float(dim_in_lateral)  # size / shape[0] = C_in * 1 * 1
        scale = math.sqrt(3.0 / fan_in)
        w = jax.random.uniform(
            key, (dim_out, dim_in_lateral), jnp.float32, -scale, scale)
    b = jnp.zeros((dim_out,), jnp.float32)
    return w, b


def top_down_lateral(top_blob, lateral_blob, weight, bias, *, out_dtype=None):
    """TopDownLateral forward.

    top_blob:     (N, dim_out, H, W) or (N, dim_out, H//2, W//2), NCHW
    lateral_blob: (N, dim_in_lateral, H, W), NCHW
    weight:       (dim_out, dim_in_lateral) 1x1-conv weight (or ...,1,1)
    bias:         (dim_out,)

    Activations stream in their NATIVE dtype (pass bf16 tensors to halve HBM
    traffic); accumulation is always f32 and bias stays f32.
    """
    n, c_in, h, w = lateral_blob.shape
    c_out = int(weight.shape[0])
    if out_dtype is None:
        out_dtype = jnp.result_type(lateral_blob.dtype, top_blob.dtype)

    x_b = jnp.dtype(lateral_blob.dtype).itemsize
    t_b = jnp.dtype(top_blob.dtype).itemsize
    o_b = jnp.dtype(out_dtype).itemsize

    w_mat = weight.reshape(c_out, c_in).astype(lateral_blob.dtype)  # tiny cast
    w_b = jnp.dtype(w_mat.dtype).itemsize
    b_col = bias.reshape(c_out, 1).astype(jnp.float32)

    x3 = lateral_blob.reshape(n, c_in, h * w)  # free reshape (contiguous NCHW)

    if tuple(top_blob.shape) != (n, c_out, h, w):
        if h % 2 or w % 2 or tuple(top_blob.shape) != (n, c_out, h // 2, w // 2):
            raise ValueError(
                f"top_blob shape {tuple(top_blob.shape)} is neither the lateral "
                f"output shape {(n, c_out, h, w)} nor its exact half resolution; "
                "TopDownLateral only supports nearest upsampling with scale 2.")
        ht, wt = h // 2, w // 2
        thh, vmem_limit = _pick_fused_band(n, c_in, c_out, ht, wt,
                                           x_b, t_b, o_b, w_b)
        if thh is not None:
            out3 = _fused_upsample_call(
                x3, w_mat, b_col, top_blob.reshape(n, c_out, ht * wt),
                thh, ht, wt, out_dtype, vmem_limit)
            return out3.reshape(n, c_out, h, w)
        # Rare fallback (no legal row-band fits VMEM): materialize the 2x
        # upsample in the wrapper and reuse the plain add kernel.
        # TODO(synk): add a W-tiled fused variant to cover this corner too.
        td = jnp.broadcast_to(top_blob[:, :, :, None, :, None],
                              (n, c_out, ht, 2, wt, 2)).reshape(n, c_out, h, w)
    else:
        td = top_blob

    td3 = td.reshape(n, c_out, h * w)
    tl, vmem_limit = _pick_lane_tile(n, h * w, c_in, c_out,
                                     x_b, jnp.dtype(td3.dtype).itemsize, o_b, w_b)
    out3 = _lateral_add_call(x3, w_mat, b_col, td3, tl, out_dtype, vmem_limit)
    return out3.reshape(n, c_out, h, w)


# ----------------------------------- main ------------------------------------ #
if __name__ == "__main__":
    key = jax.random.PRNGKey(0)
    k_w, k_top, k_lat = jax.random.split(key, 3)

    N = 2
    dim_in_lateral = 4
    dim_out = 8
    H = W = 16  # lateral spatial size; top is H/2 x W/2 -> exercises the fused upsample

    weight, bias = xavier_fill_params(k_w, dim_out, dim_in_lateral)
    top_half = jax.random.normal(k_top, (N, dim_out, H // 2, W // 2), jnp.float32)
    lateral = jax.random.normal(k_lat, (N, dim_in_lateral, H, W), jnp.float32)

    # Pure-JAX reference (1x1 conv == channel matmul; nearest 2x upsample add).
    lat_ref = (jnp.einsum("nchw,oc->nohw", lateral, weight)
               + bias[None, :, None, None])
    td_ref = jnp.repeat(jnp.repeat(top_half, 2, axis=2), 2, axis=3)
    ref_up = lat_ref + td_ref

    # 1) Fused in-kernel 2x nearest-upsample path (f32, matches PyTorch numerics).
    out = jax.block_until_ready(top_down_lateral(top_half, lateral, weight, bias))
    assert out.shape == (N, dim_out, H, W) and out.dtype == jnp.float32
    assert jnp.allclose(out, ref_up, atol=1e-5, rtol=1e-5)

    # 2) Same-resolution path (shapes already match -> no upsample).
    top_full = jax.random.normal(k_top, (N, dim_out, H, W), jnp.float32)
    out_same = jax.block_until_ready(
        top_down_lateral(top_full, lateral, weight, bias))
    assert jnp.allclose(out_same, lat_ref + top_full, atol=1e-5, rtol=1e-5)

    # 3) bf16-producer path: activations already arrive in bf16 (no wrapper
    #    casts), f32 accumulation in-kernel.
    out_bf16 = jax.block_until_ready(
        top_down_lateral(top_half.astype(jnp.bfloat16),
                         lateral.astype(jnp.bfloat16), weight, bias))
    assert out_bf16.shape == (N, dim_out, H, W)
    assert out_bf16.dtype == jnp.bfloat16
    assert jnp.allclose(out_bf16.astype(jnp.float32), ref_up, atol=1e-1, rtol=5e-2)

    print("KERNEL_OK")
</pallas_src>

<mosaic_0001>
module attributes {stable_mosaic.version = 11 : i64} {
  func.func @kernel(%arg0: i32, %arg1: i32, %arg2: memref<1x4x256xf32, #tpu.memory_space<vmem>>, %arg3: memref<8x4xf32, #tpu.memory_space<vmem>>, %arg4: memref<8x1xf32, #tpu.memory_space<vmem>>, %arg5: memref<8x16xf32, #tpu.memory_space<vmem>>, %arg6: memref<1x8x64xf32, #tpu.memory_space<vmem>>, %arg7: memref<1x8x256xf32, #tpu.memory_space<vmem>>) attributes {dimension_semantics = [#tpu.dimension_semantics<parallel>, #tpu.dimension_semantics<parallel>], iteration_bounds = array<i64: 2, 1>, scalar_prefetch = 0 : i64, scratch_operands = 0 : i64, tpu.core_type = #tpu.core_type<tc>, window_params = [{transform_indices = @transform_0, window_bounds = array<i64: 1, 4, 256>}, {pipeline_mode = #tpu.pipeline_mode<synchronous>, transform_indices = @transform_1, window_bounds = array<i64: 8, 4>}, {pipeline_mode = #tpu.pipeline_mode<synchronous>, transform_indices = @transform_2, window_bounds = array<i64: 8, 1>}, {pipeline_mode = #tpu.pipeline_mode<synchronous>, transform_indices = @transform_3, window_bounds = array<i64: 8, 16>}, {transform_indices = @transform_4, window_bounds = array<i64: 1, 8, 64>}, {transform_indices = @transform_5, window_bounds = array<i64: 1, 8, 256>}]} {
    %c0 = arith.constant 0 : index
    %c0_0 = arith.constant 0 : index
    %0 = vector.load %arg3[%c0, %c0_0] : memref<8x4xf32, #tpu.memory_space<vmem>>, vector<8x4xf32>
    %c0_1 = arith.constant 0 : index
    %c0_2 = arith.constant 0 : index
    %c0_3 = arith.constant 0 : index
    %1 = vector.load %arg2[%c0_1, %c0_2, %c0_3] : memref<1x4x256xf32, #tpu.memory_space<vmem>>, vector<1x4x256xf32>
    %2 = vector.shape_cast %1 : vector<1x4x256xf32> to vector<4x256xf32>
    %cst = arith.constant dense<0.000000e+00> : vector<8x256xf32>
    %3 = tpu.matmul %0, %2, %cst {dimension_numbers = #tpu.dot_dimension_numbers<[1], [0], [0], [1], [0, 0, 1, 1], [], []>} : vector<8x4xf32>, vector<4x256xf32>, vector<8x256xf32> -> vector<8x256xf32>
    %c0_4 = arith.constant 0 : index
    %c0_5 = arith.constant 0 : index
    %c0_6 = arith.constant 0 : index
    %4 = vector.load %arg6[%c0_4, %c0_5, %c0_6] : memref<1x8x64xf32, #tpu.memory_space<vmem>>, vector<1x8x64xf32>
    %5 = vector.shape_cast %4 : vector<1x8x64xf32> to vector<8x64xf32>
    %6 = vector.extract_strided_slice %5 {offsets = [0, 0], sizes = [8, 8], strides = [1, 1]} : vector<8x64xf32> to vector<8x8xf32>
    %c0_7 = arith.constant 0 : index
    %c0_8 = arith.constant 0 : index
    %7 = vector.load %arg5[%c0_7, %c0_8] : memref<8x16xf32, #tpu.memory_space<vmem>>, vector<8x16xf32>
    %cst_9 = arith.constant dense<0.000000e+00> : vector<8x16xf32>
    %8 = tpu.matmul %6, %7, %cst_9 {dimension_numbers = #tpu.dot_dimension_numbers<[1], [0], [0], [1], [0, 0, 1, 1], [], []>} : vector<8x8xf32>, vector<8x16xf32>, vector<8x16xf32> -> vector<8x16xf32>
    %9 = vector.extract_strided_slice %5 {offsets = [0, 8], sizes = [8, 8], strides = [1, 1]} : vector<8x64xf32> to vector<8x8xf32>
    %c0_10 = arith.constant 0 : index
    %c0_11 = arith.constant 0 : index
    %10 = vector.load %arg5[%c0_10, %c0_11] : memref<8x16xf32, #tpu.memory_space<vmem>>, vector<8x16xf32>
    %cst_12 = arith.constant dense<0.000000e+00> : vector<8x16xf32>
    %11 = tpu.matmul %9, %10, %cst_12 {dimension_numbers = #tpu.dot_dimension_numbers<[1], [0], [0], [1], [0, 0, 1, 1], [], []>} : vector<8x8xf32>, vector<8x16xf32>, vector<8x16xf32> -> vector<8x16xf32>
    %12 = vector.extract_strided_slice %5 {offsets = [0, 16], sizes = [8, 8], strides = [1, 1]} : vector<8x64xf32> to vector<8x8xf32>
    %c0_13 = arith.constant 0 : index
    %c0_14 = arith.constant 0 : index
    %13 = vector.load %arg5[%c0_13, %c0_14] : memref<8x16xf32, #tpu.memory_space<vmem>>, vector<8x16xf32>
    %cst_15 = arith.constant dense<0.000000e+00> : vector<8x16xf32>
    %14 = tpu.matmul %12, %13, %cst_15 {dimension_numbers = #tpu.dot_dimension_numbers<[1], [0], [0], [1], [0, 0, 1, 1], [], []>} : vector<8x8xf32>, vector<8x16xf32>, vector<8x16xf32> -> vector<8x16xf32>
    %15 = vector.extract_strided_slice %5 {offsets = [0, 24], sizes = [8, 8], strides = [1, 1]} : vector<8x64xf32> to vector<8x8xf32>
    %c0_16 = arith.constant 0 : index
    %c0_17 = arith.constant 0 : index
    %16 = vector.load %arg5[%c0_16, %c0_17] : memref<8x16xf32, #tpu.memory_space<vmem>>, vector<8x16xf32>
    %cst_18 = arith.constant dense<0.000000e+00> : vector<8x16xf32>
    %17 = tpu.matmul %15, %16, %cst_18 {dimension_numbers = #tpu.dot_dimension_numbers<[1], [0], [0], [1], [0, 0, 1, 1], [], []>} : vector<8x8xf32>, vector<8x16xf32>, vector<8x16xf32> -> vector<8x16xf32>
    %18 = vector.extract_strided_slice %5 {offsets = [0, 32], sizes = [8, 8], strides = [1, 1]} : vector<8x64xf32> to vector<8x8xf32>
    %c0_19 = arith.constant 0 : index
    %c0_20 = arith.constant 0 : index
    %19 = vector.load %arg5[%c0_19, %c0_20] : memref<8x16xf32, #tpu.memory_space<vmem>>, vector<8x16xf32>
    %cst_21 = arith.constant dense<0.000000e+00> : vector<8x16xf32>
    %20 = tpu.matmul %18, %19, %cst_21 {dimension_numbers = #tpu.dot_dimension_numbers<[1], [0], [0], [1], [0, 0, 1, 1], [], []>} : vector<8x8xf32>, vector<8x16xf32>, vector<8x16xf32> -> vector<8x16xf32>
    %21 = vector.extract_strided_slice %5 {offsets = [0, 40], sizes = [8, 8], strides = [1, 1]} : vector<8x64xf32> to vector<8x8xf32>
    %c0_22 = arith.constant 0 : index
    %c0_23 = arith.constant 0 : index
    %22 = vector.load %arg5[%c0_22, %c0_23] : memref<8x16xf32, #tpu.memory_space<vmem>>, vector<8x16xf32>
    %cst_24 = arith.constant dense<0.000000e+00> : vector<8x16xf32>
    %23 = tpu.matmul %21, %22, %cst_24 {dimension_numbers = #tpu.dot_dimension_numbers<[1], [0], [0], [1], [0, 0, 1, 1], [], []>} : vector<8x8xf32>, vector<8x16xf32>, vector<8x16xf32> -> vector<8x16xf32>
    %24 = vector.extract_strided_slice %5 {offsets = [0, 48], sizes = [8, 8], strides = [1, 1]} : vector<8x64xf32> to vector<8x8xf32>
    %c0_25 = arith.constant 0 : index
    %c0_26 = arith.constant 0 : index
    %25 = vector.load %arg5[%c0_25, %c0_26] : memref<8x16xf32, #tpu.memory_space<vmem>>, vector<8x16xf32>
    %cst_27 = arith.constant dense<0.000000e+00> : vector<8x16xf32>
    %26 = tpu.matmul %24, %25, %cst_27 {dimension_numbers = #tpu.dot_dimension_numbers<[1], [0], [0], [1], [0, 0, 1, 1], [], []>} : vector<8x8xf32>, vector<8x16xf32>, vector<8x16xf32> -> vector<8x16xf32>
    %27 = vector.extract_strided_slice %5 {offsets = [0, 56], sizes = [8, 8], strides = [1, 1]} : vector<8x64xf32> to vector<8x8xf32>
    %c0_28 = arith.constant 0 : index
    %c0_29 = arith.constant 0 : index
    %28 = vector.load %arg5[%c0_28, %c0_29] : memref<8x16xf32, #tpu.memory_space<vmem>>, vector<8x16xf32>
    %cst_30 = arith.constant dense<0.000000e+00> : vector<8x16xf32>
    %29 = tpu.matmul %27, %28, %cst_30 {dimension_numbers = #tpu.dot_dimension_numbers<[1], [0], [0], [1], [0, 0, 1, 1], [], []>} : vector<8x8xf32>, vector<8x16xf32>, vector<8x16xf32> -> vector<8x16xf32>
    %30 = tpu.concatenate %8, %8, %11, %11, %14, %14, %17, %17, %20, %20, %23, %23, %26, %26, %29, %29 in 1 : vector<8x16xf32>, vector<8x16xf32>, vector<8x16xf32>, vector<8x16xf32>, vector<8x16xf32>, vector<8x16xf32>, vector<8x16xf32>, vector<8x16xf32>, vector<8x16xf32>, vector<8x16xf32>, vector<8x16xf32>, vector<8x16xf32>, vector<8x16xf32>, vector<8x16xf32>, vector<8x16xf32>, vector<8x16xf32> -> vector<8x256xf32>
    %c0_31 = arith.constant 0 : index
    %c0_32 = arith.constant 0 : index
    %31 = vector.load %arg4[%c0_31, %c0_32] : memref<8x1xf32, #tpu.memory_space<vmem>>, vector<8x1xf32>
    %32 = vector.broadcast %31 : vector<8x1xf32> to vector<8x256xf32>
    %33 = arith.addf %3, %32 : vector<8x256xf32>
    %34 = arith.addf %33, %30 : vector<8x256xf32>
    %c0_33 = arith.constant 0 : index
    %c0_34 = arith.constant 0 : index
    %c0_35 = arith.constant 0 : index
    %35 = vector.load %arg7[%c0_33, %c0_34, %c0_35] : memref<1x8x256xf32, #tpu.memory_space<vmem>>, vector<1x8x256xf32>
    %36 = vector.shape_cast %35 : vector<1x8x256xf32> to vector<8x256xf32>
    %37 = vector.shape_cast %34 : vector<8x256xf32> to vector<1x8x256xf32>
    tpu.vector_store %arg7[%c0_33, %c0_34, %c0_35], %37 {strides = array<i32>} : memref<1x8x256xf32, #tpu.memory_space<vmem>>, vector<1x8x256xf32>,
    return
  }
  func.func @transform_0(%arg0: i32, %arg1: i32) -> (i32, i32, i32) {
    %c0_i32 = arith.constant 0 : i32
    %c0_i32_0 = arith.constant 0 : i32
    return %arg0, %c0_i32, %arg1 : i32, i32, i32
  }
  func.func @transform_1(%arg0: i32, %arg1: i32) -> (i32, i32) {
    %c0_i32 = arith.constant 0 : i32
    %c0_i32_0 = arith.constant 0 : i32
    %c0_i32_1 = arith.constant 0 : i32
    return %c0_i32, %c0_i32_0 : i32, i32
  }
  func.func @transform_2(%arg0: i32, %arg1: i32) -> (i32, i32) {
    %c0_i32 = arith.constant 0 : i32
    %c0_i32_0 = arith.constant 0 : i32
    %c0_i32_1 = arith.constant 0 : i32
    return %c0_i32, %c0_i32_0 : i32, i32
  }
  func.func @transform_3(%arg0: i32, %arg1: i32) -> (i32, i32) {
    %c0_i32 = arith.constant 0 : i32
    %c0_i32_0 = arith.constant 0 : i32
    %c0_i32_1 = arith.constant 0 : i32
    return %c0_i32, %c0_i32_0 : i32, i32
  }
  func.func @transform_4(%arg0: i32, %arg1: i32) -> (i32, i32, i32) {
    %c0_i32 = arith.constant 0 : i32
    %c0_i32_0 = arith.constant 0 : i32
    return %arg0, %c0_i32, %arg1 : i32, i32, i32
  }
  func.func @transform_5(%arg0: i32, %arg1: i32) -> (i32, i32, i32) {
    %c0_i32 = arith.constant 0 : i32
    %c0_i32_0 = arith.constant 0 : i32
    return %arg0, %c0_i32, %arg1 : i32, i32, i32
  }
}

</mosaic_0001>

<llo_original>
// kernel: tpu_custom_call.1
$region0: #{tpu_custom_call.1}
  #allocation0 [shape = 'u32[]', space=smem, size = 0x4, offset = 0x4, fixed_abs, tag = 'smem constant byte address 0x4 - core index']
  #allocation1 [shape = 'u32[144,128]{1,0:T(1,128)}', space=vmem, size = 0x12000, scoped, tag = 'internal scratch']
  %s0 = inlined_call_operand.vmem [shape: f32[2,4,256], index: 0, kind: input, shape index: {}]
  %s1 = inlined_call_operand.vmem [shape: f32[8,4], index: 1, kind: input, shape index: {}]
  %s2 = inlined_call_operand.vmem [shape: f32[8,1], index: 2, kind: input, shape index: {}]
  %s3 = inlined_call_operand.hbm [shape: f32[8,16], index: 3, kind: input, shape index: {}]
  %s4 = inlined_call_operand.vmem [shape: f32[2,8,64], index: 4, kind: input, shape index: {}]
  %s5 = inlined_call_operand.hbm [shape: f32[2,8,256], index: 5, kind: output, shape index: {}]
  %s6 = sld [smem:[#allocation0]]
  $region57: #{tpu_custom_call.1} parent=0
    _
  %s8 = ssub.s32 1, %s6
  %s9 = scalar_select 0, %s8, %s6
  $region1: #{tpu_custom_call.1} parent=0
    #allocation2 [shape = 'u8[4096]{0}', space=vmem, size = 0x1000, scoped, tag = 'input window, operand 3, single buffered']
    #allocation3 [shape = 's32[2]{0}', space=sflag, size = 0x8, scoped, tag = 'scoped memory for tpu_custom_call.1']
    #allocation4 [shape = 's32[2]{0}', space=sflag, size = 0x8, scoped, tag = 'scoped memory for tpu_custom_call.1']
    #allocation5 [shape = 'u8[16384]{0}', space=vmem, size = 0x4000, scoped, tag = 'output window, operand 0']
    %10 = vsyncpa [#allocation3], 0
    %11 = vsyncpa [#allocation4], 0
    %s12 = scalar_lea.sflag [#allocation4], 1
    %13 = vsyncpa %s12, 0
    loop: start=0, step=1, limit=4
    $region2: #{tpu_custom_call.1} parent=1 // loop_pre_header
      _
    $region3: #{tpu_custom_call.1} parent=1 // loop_header
      %s15 = sphi 0, %s19
      %p16 = scmp.ge.s32.totalorder %s15, 4
      %s22 = sphi 0, %s34
      %s23 = sphi 0, %s30
      %s24 = sphi 0, %s22
      %s25 = sphi 0, %s23
      %s26 = sphi 0, %s24
      %s27 = sphi 0, %s25
      %s39 = sphi 0, %s41
      %s42 = sphi 0, %s39
      %s43 = sphi 0, %s42
      %s59 = sphi 0, %s43
      %s63 = sphi 0, %s63
      %s65 = sphi 0, %s63
      %s66 = sphi 0, %s65
      %s80 = sphi 0, %s66
      %s84 = sphi 0, %s84
      %s86 = sphi 0, %s84
      %s87 = sphi 0, %s86
      %s101 = sphi 0, %s87
      %s105 = sphi 0, %s105
      %s107 = sphi 0, %s105
      %s108 = sphi 0, %s107
      %s122 = sphi 0, %s108
      %s130 = sphi 0, %s132
      %s133 = sphi 0, %s130
      %s134 = sphi 0, %s133
      %s150 = sphi 0, %s134
      %s158 = sphi 0, %s160
      %s161 = sphi 0, %s158
      %s162 = sphi 0, %s161
      %s178 = sphi 0, %s162
    $region4: #{tpu_custom_call.1} parent=1 // loop_header_branch
      %18 = sbr.rel (%p16) target = $region8
    $region5: #{tpu_custom_call.1} parent=1 // loop_body
      %s20 = ssub.s32 %s15, 1
      %s21 = ssub.s32 %s15, 2
      %s28 = sadd.s32 1, %s23
      %p29 = scmp.ge.s32.totalorder %s28, 1
      %s30 = scalar_select %p29, 0, %s28
      %s31 = sadd.s32 1, %s22
      %s32 = scalar_select %p29, %s31, %s22
      %p33 = scmp.ge.s32.totalorder %s32, 2
      %s34 = scalar_select %p33, 0, %s32
      %s35 = ssub.s32 %s22, %s34
      %s36 = ssub.s32 %s23, %s30
      %s37 = sor.u32 %s35, %s36
      %p38 = scmp.eq.s32.totalorder %s37, 0
      %s40 = sadd.s32 %s39, 1
      %s41 = scalar_select %p38, %s39, %s40
      %p44 = pneg %p38
      %p45 = scmp.eq.s32.totalorder %s15, 1
      %p46 = por %p44, %p45
      %p47 = scmp.ne.s32.totalorder %s39, %s42
      %p48 = scmp.eq.s32.totalorder %s15, 0
      %p49 = por %p47, %p48
      %p50 = scmp.ne.s32.totalorder %s39, %s42
      %p51 = scmp.eq.s32.totalorder %s20, 1
      %p52 = por %p50, %p51
      %p53 = scmp.ne.s32.totalorder %s42, %s43
      %p54 = scmp.eq.s32.totalorder %s20, 0
      %p55 = por %p53, %p54
      %p56 = scmp.ne.s32.totalorder %s42, %s43
      %p57 = scmp.eq.s32.totalorder %s21, 1
      %p58 = por %p56, %p57
      %p60 = scmp.ne.s32.totalorder %s43, %s59
      %p61 = scmp.eq.s32.totalorder %s21, 0
      %p62 = por %p60, %p61
      %s64 = sadd.s32 %s63, 1
      %p67 = scmp.eq.s32.totalorder %s15, 1
      %p68 = scmp.ne.s32.totalorder %s63, %s65
      %p69 = scmp.eq.s32.totalorder %s15, 0
      %p70 = por %p68, %p69
      %p71 = scmp.ne.s32.totalorder %s63, %s65
      %p72 = scmp.eq.s32.totalorder %s20, 1
      %p73 = por %p71, %p72
      %p74 = scmp.ne.s32.totalorder %s65, %s66
      %p75 = scmp.eq.s32.totalorder %s20, 0
      %p76 = por %p74, %p75
      %p77 = scmp.ne.s32.totalorder %s65, %s66
      %p78 = scmp.eq.s32.totalorder %s21, 1
      %p79 = por %p77, %p78
      %p81 = scmp.ne.s32.totalorder %s66, %s80
      %p82 = scmp.eq.s32.totalorder %s21, 0
      %p83 = por %p81, %p82
      %s85 = sadd.s32 %s84, 1
      %p88 = scmp.eq.s32.totalorder %s15, 1
      %p89 = scmp.ne.s32.totalorder %s84, %s86
      %p90 = scmp.eq.s32.totalorder %s15, 0
      %p91 = por %p89, %p90
      %p92 = scmp.ne.s32.totalorder %s84, %s86
      %p93 = scmp.eq.s32.totalorder %s20, 1
      %p94 = por %p92, %p93
      %p95 = scmp.ne.s32.totalorder %s86, %s87
      %p96 = scmp.eq.s32.totalorder %s20, 0
      %p97 = por %p95, %p96
      %p98 = scmp.ne.s32.totalorder %s86, %s87
      %p99 = scmp.eq.s32.totalorder %s21, 1
      %p100 = por %p98, %p99
      %p102 = scmp.ne.s32.totalorder %s87, %s101
      %p103 = scmp.eq.s32.totalorder %s21, 0
      %p104 = por %p102, %p103
      %s106 = sadd.s32 %s105, 1
      %p109 = scmp.eq.s32.totalorder %s15, 1
      %p110 = scmp.ne.s32.totalorder %s105, %s107
      %p111 = scmp.eq.s32.totalorder %s15, 0
      %p112 = por %p110, %p111
      %p113 = scmp.ne.s32.totalorder %s105, %s107
      %p114 = scmp.eq.s32.totalorder %s20, 1
      %p115 = por %p113, %p114
      %p116 = scmp.ne.s32.totalorder %s107, %s108
      %p117 = scmp.eq.s32.totalorder %s20, 0
      %p118 = por %p116, %p117
      %p119 = scmp.ne.s32.totalorder %s107, %s108
      %p120 = scmp.eq.s32.totalorder %s21, 1
      %p121 = por %p119, %p120
      %p123 = scmp.ne.s32.totalorder %s108, %s122
      %p124 = scmp.eq.s32.totalorder %s21, 0
      %p125 = por %p123, %p124
      %s126 = ssub.s32 %s22, %s34
      %s127 = ssub.s32 %s23, %s30
      %s128 = sor.u32 %s126, %s127
      %p129 = scmp.eq.s32.totalorder %s128, 0
      %s131 = sadd.s32 %s130, 1
      %s132 = scalar_select %p129, %s130, %s131
      %p135 = pneg %p129
      %p136 = scmp.eq.s32.totalorder %s15, 1
      %p137 = por %p135, %p136
      %p138 = scmp.ne.s32.totalorder %s130, %s133
      %p139 = scmp.eq.s32.totalorder %s15, 0
      %p140 = por %p138, %p139
      %p141 = scmp.ne.s32.totalorder %s130, %s133
      %p142 = scmp.eq.s32.totalorder %s20, 1
      %p143 = por %p141, %p142
      %p144 = scmp.ne.s32.totalorder %s133, %s134
      %p145 = scmp.eq.s32.totalorder %s20, 0
      %p146 = por %p144, %p145
      %p147 = scmp.ne.s32.totalorder %s133, %s134
      %p148 = scmp.eq.s32.totalorder %s21, 1
      %p149 = por %p147, %p148
      %p151 = scmp.ne.s32.totalorder %s134, %s150
      %p152 = scmp.eq.s32.totalorder %s21, 0
      %p153 = por %p151, %p152
      %s154 = ssub.s32 %s22, %s34
      %s155 = ssub.s32 %s23, %s30
      %s156 = sor.u32 %s154, %s155
      %p157 = scmp.eq.s32.totalorder %s156, 0
      %s159 = sadd.s32 %s158, 1
      %s160 = scalar_select %p157, %s158, %s159
      %p163 = pneg %p157
      %p164 = scmp.eq.s32.totalorder %s15, 1
      %p165 = por %p163, %p164
      %p166 = scmp.ne.s32.totalorder %s158, %s161
      %p167 = scmp.eq.s32.totalorder %s15, 0
      %p168 = por %p166, %p167
      %p169 = scmp.ne.s32.totalorder %s158, %s161
      %p170 = scmp.eq.s32.totalorder %s20, 1
      %p171 = por %p169, %p170
      %p172 = scmp.ne.s32.totalorder %s161, %s162
      %p173 = scmp.eq.s32.totalorder %s20, 0
      %p174 = por %p172, %p173
      %p175 = scmp.ne.s32.totalorder %s161, %s162
      %p176 = scmp.eq.s32.totalorder %s21, 1
      %p177 = por %p175, %p176
      %p179 = scmp.ne.s32.totalorder %s162, %s178
      %p180 = scmp.eq.s32.totalorder %s21, 0
      %p181 = por %p179, %p180
      %p182 = scmp.le.s32.totalorder 1, %s15
      %p183 = scmp.lt.s32.totalorder %s15, 3
      %p184 = pnand %p182, %p183
      %p185 = pneg %p184
      // Predicated region
      $region9: #{tpu_custom_call.1} parent=5 // pred_check
        _
      $region10: #{tpu_custom_call.1} parent=5 // pred_check_branch
        %187 = sbr.rel (%p184) target = $region12
      $region11: #{tpu_custom_call.1} parent=5 // pred_region
        %s188 = ssub.s32 %s15, 1
        // Predicated region
        $region13: #{tpu_custom_call.1} parent=11 // pred_check
          %p189 = pneg %p76
        $region14: #{tpu_custom_call.1} parent=11 // pred_check_branch
          %191 = sbr.rel (%p189) target = $region16
        $region15: #{tpu_custom_call.1} parent=11 // pred_region
          _
        $region16: #{tpu_custom_call.1} parent=11 // pred_fallthru
          _
        // Predicated region
        $region17: #{tpu_custom_call.1} parent=11 // pred_check
          %p192 = pneg %p97
        $region18: #{tpu_custom_call.1} parent=11 // pred_check_branch
          %194 = sbr.rel (%p192) target = $region20
        $region19: #{tpu_custom_call.1} parent=11 // pred_region
          _
        $region20: #{tpu_custom_call.1} parent=11 // pred_fallthru
          _
        // Predicated region
        $region21: #{tpu_custom_call.1} parent=11 // pred_check
          %p195 = pneg %p118
        $region22: #{tpu_custom_call.1} parent=11 // pred_check_branch
          %197 = sbr.rel (%p195) target = $region24
        $region23: #{tpu_custom_call.1} parent=11 // pred_region
          %s199 = ssub.s32 128, 128
          %200 = vsyncadd [#allocation3], %s199
          %s202 = sshll.u32 [#allocation2], 4
          %s203 = int_to_ptr.vmem [resolvable:$true] %s202
          %205 = dma.hbm_to_vmem [thread:$0]  %s3, 128, %s203, [#allocation3]
        $region24: #{tpu_custom_call.1} parent=11 // pred_fallthru
          _
      $region12: #{tpu_custom_call.1} parent=5 // pred_fallthru
        _
      %p206 = scmp.lt.s32.totalorder %s15, 2
      // Predicated region
      $region25: #{tpu_custom_call.1} parent=5 // pred_check
        %p207 = pneg %p206
      $region26: #{tpu_custom_call.1} parent=5 // pred_check_branch
        %209 = sbr.rel (%p207) target = $region28
      $region27: #{tpu_custom_call.1} parent=5 // pred_region
        // Predicated region
        $region29: #{tpu_custom_call.1} parent=27 // pred_check
          %p210 = pneg %p49
        $region30: #{tpu_custom_call.1} parent=27 // pred_check_branch
          %212 = sbr.rel (%p210) target = $region32
        $region31: #{tpu_custom_call.1} parent=27 // pred_region
          %s213 = smul.u32 2, %s23
          %p214 = scmp.lt.s32.totalorder %s22, 1
          %s215 = scalar_select %p214, %s22, 1
          %p216 = scmp.lt.s32.totalorder %s213, 1
          %s217 = scalar_select %p216, %s213, 1
          %s218 = smul.addr %s215, 2
          %s219 = sadd.s32 %s217, %s218
          %s220 = smul.addr %s219, 4
          %s221 = scalar_lea.vmem %s0, %s220
          %s222 = smul.u32 2, %s23
        $region32: #{tpu_custom_call.1} parent=27 // pred_fallthru
          _
        // Predicated region
        $region33: #{tpu_custom_call.1} parent=27 // pred_check
          %p223 = pneg %p140
        $region34: #{tpu_custom_call.1} parent=27 // pred_check_branch
          %225 = sbr.rel (%p223) target = $region36
        $region35: #{tpu_custom_call.1} parent=27 // pred_region
          %p226 = scmp.lt.s32.totalorder %s22, 1
          %s227 = scalar_select %p226, %s22, 1
          %p228 = scmp.lt.s32.totalorder %s23, 0
          %s229 = scalar_select %p228, %s23, 0
          %s230 = sadd.s32 %s229, %s227
          %s231 = smul.addr %s230, 8
          %s232 = scalar_lea.vmem %s4, %s231
        $region36: #{tpu_custom_call.1} parent=27 // pred_fallthru
          _
      $region28: #{tpu_custom_call.1} parent=5 // pred_fallthru
        _
      %p233 = scmp.le.s32.totalorder 1, %s15
      %p234 = scmp.lt.s32.totalorder %s15, 3
      %p235 = pnand %p233, %p234
      %p236 = pneg %p235
      // Predicated region
      $region37: #{tpu_custom_call.1} parent=5 // pred_check
        _
      $region38: #{tpu_custom_call.1} parent=5 // pred_check_branch
        %238 = sbr.rel (%p235) target = $region40
      $region39: #{tpu_custom_call.1} parent=5 // pred_region
        %s239 = ssub.s32 %s15, 1
        // Predicated region
        $region41: #{tpu_custom_call.1} parent=39 // pred_check
          %p240 = pneg %p118
        $region42: #{tpu_custom_call.1} parent=39 // pred_check_branch
          %242 = sbr.rel (%p240) target = $region44
        $region43: #{tpu_custom_call.1} parent=39 // pred_region
          %243 = dma.done [#allocation3], 128
        $region44: #{tpu_custom_call.1} parent=39 // pred_fallthru
          _
        %s244 = smul.u32 2, %s25
        %p245 = scmp.lt.s32.totalorder %s24, 1
        %s246 = scalar_select %p245, %s24, 1
        %p247 = scmp.lt.s32.totalorder %s244, 1
        %s248 = scalar_select %p247, %s244, 1
        %s249 = smul.addr %s246, 2
        %s250 = sadd.s32 %s248, %s249
        %s251 = smul.addr %s250, 4
        %s252 = scalar_lea.vmem %s0, %s251
        %p253 = pneg %p55
        %p254 = pneg %p52
        %p255 = pneg %p76
        %p256 = pneg %p73
        %p257 = pneg %p97
        %p258 = pneg %p94
        %p259 = pneg %p118
        %p260 = pneg %p115
        %p261 = scmp.lt.s32.totalorder %s24, 1
        %s262 = scalar_select %p261, %s24, 1
        %p263 = scmp.lt.s32.totalorder %s25, 0
        %s264 = scalar_select %p263, %s25, 0
        %s265 = sadd.s32 %s264, %s262
        %s266 = smul.addr %s265, 8
        %s267 = scalar_lea.vmem %s4, %s266
        %p268 = pneg %p146
        %p269 = pneg %p143
        %p270 = pneg %p174
        %p271 = pneg %p171
        %s272 = sand.u32 %s161, 1
        %s273 = scalar_lea.sflag [#allocation4], %s272
        %s274 = sand.u32 %s161, 1
        %s275 = smul.addr %s274, 16
        %s276 = scalar_lea.vmem [#allocation5], %s275
        %s277 = smul.u32 2, %s25
        %p278 = scmp.lt.s32.totalorder %s24, 1
        %s279 = scalar_select %p278, %s24, 1
        %p280 = scmp.lt.s32.totalorder %s277, 1
        %s281 = scalar_select %p280, %s277, 1
        %s282 = smul.addr %s279, 2
        %s283 = sadd.s32 %s281, %s282
        %s284 = smul.addr %s283, 4
        %s285 = scalar_lea.vmem %s0, %s284
        %s286 = smul.u32 2, %s25
        %p287 = scmp.lt.s32.totalorder %s24, 1
        %s288 = scalar_select %p287, %s24, 1
        %p289 = scmp.lt.s32.totalorder %s25, 0
        %s290 = scalar_select %p289, %s25, 0
        %s291 = sadd.s32 %s290, %s288
        %s292 = smul.addr %s291, 8
        %s293 = scalar_lea.vmem %s4, %s292
        %s294 = smul.u32 2, %s25
        %v295 = vld [vmem:[%s1] sm:$0xff]
        %v296 = vld [vmem:[%s285] sm:$0xff]
        %v297 = vld [vmem:[%s293] sm:$0xff]
        %v298 = vld [vmem:[#allocation2] sm:$0xff]
        %vm299 = vcmask 64512
        %v301 = vsel %vm299, %v297, 0
        %303 = vmatprep.subr.mxu0 0.0
        %304 = vmatpush1.msra.mxu0 %v298
        %305 = vmatprep.subr.mxu0 0.0
        %306 = vmatpush1.msra.mxu0 0.0
        %307 = vmatprep.subr.mxu0 0.0
        %308 = vmatpush1.msra.mxu0 0.0
        %309 = vmatprep.subr.mxu0 0.0
        %310 = vmatpush1.msra.mxu0 0.0
        %311 = vmatprep.subr.mxu0 0.0
        %312 = vmatpush1.msra.mxu0 0.0
        %313 = vmatprep.subr.mxu0 0.0
        %314 = vmatpush1.msra.mxu0 0.0
        %315 = vmatprep.subr.mxu0 0.0
        %316 = vmatpush1.msra.mxu0 0.0
        %317 = vmatprep.subr.mxu0 0.0
        %318 = vmatpush1.msra.mxu0 0.0
        %319 = vmatprep.subr.mxu0 0.0
        %320 = vmatpush1.msra.mxu0 0.0
        %321 = vmatprep.subr.mxu0 0.0
        %322 = vmatpush1.msra.mxu0 0.0
        %323 = vmatprep.subr.mxu0 0.0
        %324 = vmatpush1.msra.mxu0 0.0
        %325 = vmatprep.subr.mxu0 0.0
        %326 = vmatpush1.msra.mxu0 0.0
        %327 = vmatprep.subr.mxu0 0.0
        %328 = vmatpush1.msra.mxu0 0.0
        %329 = vmatprep.subr.mxu0 0.0
        %330 = vmatpush1.msra.mxu0 0.0
        %331 = vmatprep.subr.mxu0 0.0
        %332 = vmatpush1.msra.mxu0 0.0
        %333 = vmatprep.subr.mxu0 0.0
        %334 = vmatpush1.msra.mxu0 0.0
        %335 = vmatprep.subr.mxu0 0.0
        %336 = vmatpush1.msra.mxu0 0.0
        %337 = vmatprep.subr.mxu0 0.0
        %338 = vmatpush1.msra.mxu0 0.0
        %339 = vmatprep.subr.mxu0 0.0
        %340 = vmatpush1.msra.mxu0 0.0
        %341 = vmatprep.subr.mxu0 0.0
        %342 = vmatpush1.msra.mxu0 0.0
        %343 = vmatprep.subr.mxu0 0.0
        %344 = vmatpush1.msra.mxu0 0.0
        %345 = vmatprep.subr.mxu0 0.0
        %346 = vmatpush1.msra.mxu0 0.0
        %347 = vmatprep.subr.mxu0 0.0
        %348 = vmatpush1.msra.mxu0 0.0
        %349 = vmatprep.subr.mxu0 0.0
        %350 = vmatpush1.msra.mxu0 0.0
        %351 = vmatprep.subr.mxu0 0.0
        %352 = vmatpush1.msra.mxu0 0.0
        %353 = vmatprep.subr.mxu0 0.0
        %354 = vmatpush1.msra.mxu0 0.0
        %355 = vmatprep.subr.mxu0 0.0
        %356 = vmatpush1.msra.mxu0 0.0
        %357 = vmatprep.subr.mxu0 0.0
        %358 = vmatpush1.msra.mxu0 0.0
        %359 = vmatprep.subr.mxu0 0.0
        %360 = vmatpush1.msra.mxu0 0.0
        %361 = vmatprep.subr.mxu0 0.0
        %362 = vmatpush1.msra.mxu0 0.0
        %363 = vmatprep.subr.mxu0 0.0
        %364 = vmatpush1.msra.mxu0 0.0
        %365 = vmatprep.subr.mxu0 0.0
        %366 = vmatpush1.msra.mxu0 0.0
        %367 = vmatprep.mubr.f32.mxu0 0.0
        %368 = vmatmul.mubr.f32.gmra.mrb[0].mxu0 %v301
        %v369 = vpop.f32.mrb[0].mxu0
        %v370 = vadd.f32 0.0, %v369
        %v371 = vpop.f32.mrb[0].mxu0
        %372 = vdwg.mxu0
        %373 = vrot.lane.b32.xlu0 %v297, 120
        %v374 = vpop.permute.xlu0 %373
        %v375 = vsel %vm299, %v374, 0
        %377 = vmatprep.subr.mxu0 0.0
        %378 = vmatpush1.msra.mxu0 %v298
        %379 = vmatprep.subr.mxu0 0.0
        %380 = vmatpush1.msra.mxu0 0.0
        %381 = vmatprep.subr.mxu0 0.0
        %382 = vmatpush1.msra.mxu0 0.0
        %383 = vmatprep.subr.mxu0 0.0
        %384 = vmatpush1.msra.mxu0 0.0
        %385 = vmatprep.subr.mxu0 0.0
        %386 = vmatpush1.msra.mxu0 0.0
        %387 = vmatprep.subr.mxu0 0.0
        %388 = vmatpush1.msra.mxu0 0.0
        %389 = vmatprep.subr.mxu0 0.0
        %390 = vmatpush1.msra.mxu0 0.0
        %391 = vmatprep.subr.mxu0 0.0
        %392 = vmatpush1.msra.mxu0 0.0
        %393 = vmatprep.subr.mxu0 0.0
        %394 = vmatpush1.msra.mxu0 0.0
        %395 = vmatprep.subr.mxu0 0.0
        %396 = vmatpush1.msra.mxu0 0.0
        %397 = vmatprep.subr.mxu0 0.0
        %398 = vmatpush1.msra.mxu0 0.0
        %399 = vmatprep.subr.mxu0 0.0
        %400 = vmatpush1.msra.mxu0 0.0
        %401 = vmatprep.subr.mxu0 0.0
        %402 = vmatpush1.msra.mxu0 0.0
        %403 = vmatprep.subr.mxu0 0.0
        %404 = vmatpush1.msra.mxu0 0.0
        %405 = vmatprep.subr.mxu0 0.0
        %406 = vmatpush1.msra.mxu0 0.0
        %407 = vmatprep.subr.mxu0 0.0
        %408 = vmatpush1.msra.mxu0 0.0
        %409 = vmatprep.subr.mxu0 0.0
        %410 = vmatpush1.msra.mxu0 0.0
        %411 = vmatprep.subr.mxu0 0.0
        %412 = vmatpush1.msra.mxu0 0.0
        %413 = vmatprep.subr.mxu0 0.0
        %414 = vmatpush1.msra.mxu0 0.0
        %415 = vmatprep.subr.mxu0 0.0
        %416 = vmatpush1.msra.mxu0 0.0
        %417 = vmatprep.subr.mxu0 0.0
        %418 = vmatpush1.msra.mxu0 0.0
        %419 = vmatprep.subr.mxu0 0.0
        %420 = vmatpush1.msra.mxu0 0.0
        %421 = vmatprep.subr.mxu0 0.0
        %422 = vmatpush1.msra.mxu0 0.0
        %423 = vmatprep.subr.mxu0 0.0
        %424 = vmatpush1.msra.mxu0 0.0
        %425 = vmatprep.subr.mxu0 0.0
        %426 = vmatpush1.msra.mxu0 0.0
        %427 = vmatprep.subr.mxu0 0.0
        %428 = vmatpush1.msra.mxu0 0.0
        %429 = vmatprep.subr.mxu0 0.0
        %430 = vmatpush1.msra.mxu0 0.0
        %431 = vmatprep.subr.mxu0 0.0
        %432 = vmatpush1.msra.mxu0 0.0
        %433 = vmatprep.subr.mxu0 0.0
        %434 = vmatpush1.msra.mxu0 0.0
        %435 = vmatprep.subr.mxu0 0.0
        %436 = vmatpush1.msra.mxu0 0.0
        %437 = vmatprep.subr.mxu0 0.0
        %438 = vmatpush1.msra.mxu0 0.0
        %439 = vmatprep.subr.mxu0 0.0
        %440 = vmatpush1.msra.mxu0 0.0
        %441 = vmatprep.mubr.f32.mxu0 0.0
        %442 = vmatmul.mubr.f32.gmra.mrb[0].mxu0 %v375
        %v443 = vpop.f32.mrb[0].mxu0
        %v444 = vadd.f32 0.0, %v443
        %v445 = vpop.f32.mrb[0].mxu0
        %446 = vdwg.mxu0
        %447 = vrot.lane.b32.xlu0 %v297, 112
        %v448 = vpop.permute.xlu0 %447
        %v449 = vsel %vm299, %v448, 0
        %451 = vmatprep.subr.mxu0 0.0
        %452 = vmatpush1.msra.mxu0 %v298
        %453 = vmatprep.subr.mxu0 0.0
        %454 = vmatpush1.msra.mxu0 0.0
        %455 = vmatprep.subr.mxu0 0.0
        %456 = vmatpush1.msra.mxu0 0.0
        %457 = vmatprep.subr.mxu0 0.0
        %458 = vmatpush1.msra.mxu0 0.0
        %459 = vmatprep.subr.mxu0 0.0
        %460 = vmatpush1.msra.mxu0 0.0
        %461 = vmatprep.subr.mxu0 0.0
        %462 = vmatpush1.msra.mxu0 0.0
        %463 = vmatprep.subr.mxu0 0.0
        %464 = vmatpush1.msra.mxu0 0.0
        %465 = vmatprep.subr.mxu0 0.0
        %466 = vmatpush1.msra.mxu0 0.0
        %467 = vmatprep.subr.mxu0 0.0
        %468 = vmatpush1.msra.mxu0 0.0
        %469 = vmatprep.subr.mxu0 0.0
        %470 = vmatpush1.msra.mxu0 0.0
        %471 = vmatprep.subr.mxu0 0.0
        %472 = vmatpush1.msra.mxu0 0.0
        %473 = vmatprep.subr.mxu0 0.0
        %474 = vmatpush1.msra.mxu0 0.0
        %475 = vmatprep.subr.mxu0 0.0
        %476 = vmatpush1.msra.mxu0 0.0
        %477 = vmatprep.subr.mxu0 0.0
        %478 = vmatpush1.msra.mxu0 0.0
        %479 = vmatprep.subr.mxu0 0.0
        %480 = vmatpush1.msra.mxu0 0.0
        %481 = vmatprep.subr.mxu0 0.0
        %482 = vmatpush1.msra.mxu0 0.0
        %483 = vmatprep.subr.mxu0 0.0
        %484 = vmatpush1.msra.mxu0 0.0
        %485 = vmatprep.subr.mxu0 0.0
        %486 = vmatpush1.msra.mxu0 0.0
        %487 = vmatprep.subr.mxu0 0.0
        %488 = vmatpush1.msra.mxu0 0.0
        %489 = vmatprep.subr.mxu0 0.0
        %490 = vmatpush1.msra.mxu0 0.0
        %491 = vmatprep.subr.mxu0 0.0
        %492 = vmatpush1.msra.mxu0 0.0
        %493 = vmatprep.subr.mxu0 0.0
        %494 = vmatpush1.msra.mxu0 0.0
        %495 = vmatprep.subr.mxu0 0.0
        %496 = vmatpush1.msra.mxu0 0.0
        %497 = vmatprep.subr.mxu0 0.0
        %498 = vmatpush1.msra.mxu0 0.0
        %499 = vmatprep.subr.mxu0 0.0
        %500 = vmatpush1.msra.mxu0 0.0
        %501 = vmatprep.subr.mxu0 0.0
        %502 = vmatpush1.msra.mxu0 0.0
        %503 = vmatprep.subr.mxu0 0.0
        %504 = vmatpush1.msra.mxu0 0.0
        %505 = vmatprep.subr.mxu0 0.0
        %506 = vmatpush1.msra.mxu0 0.0
        %507 = vmatprep.subr.mxu0 0.0
        %508 = vmatpush1.msra.mxu0 0.0
        %509 = vmatprep.subr.mxu0 0.0
        %510 = vmatpush1.msra.mxu0 0.0
        %511 = vmatprep.subr.mxu0 0.0
        %512 = vmatpush1.msra.mxu0 0.0
        %513 = vmatprep.subr.mxu0 0.0
        %514 = vmatpush1.msra.mxu0 0.0
        %515 = vmatprep.mubr.f32.mxu0 0.0
        %516 = vmatmul.mubr.f32.gmra.mrb[0].mxu0 %v449
        %v517 = vpop.f32.mrb[0].mxu0
        %v518 = vadd.f32 0.0, %v517
        %v519 = vpop.f32.mrb[0].mxu0
        %520 = vdwg.mxu0
        %521 = vrot.lane.b32.xlu0 %v297, 104
        %v522 = vpop.permute.xlu0 %521
        %v523 = vsel %vm299, %v522, 0
        %525 = vmatprep.subr.mxu0 0.0
        %526 = vmatpush1.msra.mxu0 %v298
        %527 = vmatprep.subr.mxu0 0.0
        %528 = vmatpush1.msra.mxu0 0.0
        %529 = vmatprep.subr.mxu0 0.0
        %530 = vmatpush1.msra.mxu0 0.0
        %531 = vmatprep.subr.mxu0 0.0
        %532 = vmatpush1.msra.mxu0 0.0
        %533 = vmatprep.subr.mxu0 0.0
        %534 = vmatpush1.msra.mxu0 0.0
        %535 = vmatprep.subr.mxu0 0.0
        %536 = vmatpush1.msra.mxu0 0.0
        %537 = vmatprep.subr.mxu0 0.0
        %538 = vmatpush1.msra.mxu0 0.0
        %539 = vmatprep.subr.mxu0 0.0
        %540 = vmatpush1.msra.mxu0 0.0
        %541 = vmatprep.subr.mxu0 0.0
        %542 = vmatpush1.msra.mxu0 0.0
        %543 = vmatprep.subr.mxu0 0.0
        %544 = vmatpush1.msra.mxu0 0.0
        %545 = vmatprep.subr.mxu0 0.0
        %546 = vmatpush1.msra.mxu0 0.0
        %547 = vmatprep.subr.mxu0 0.0
        %548 = vmatpush1.msra.mxu0 0.0
        %549 = vmatprep.subr.mxu0 0.0
        %550 = vmatpush1.msra.mxu0 0.0
        %551 = vmatprep.subr.mxu0 0.0
        %552 = vmatpush1.msra.mxu0 0.0
        %553 = vmatprep.subr.mxu0 0.0
        %554 = vmatpush1.msra.mxu0 0.0
        %555 = vmatprep.subr.mxu0 0.0
        %556 = vmatpush1.msra.mxu0 0.0
        %557 = vmatprep.subr.mxu0 0.0
        %558 = vmatpush1.msra.mxu0 0.0
        %559 = vmatprep.subr.mxu0 0.0
        %560 = vmatpush1.msra.mxu0 0.0
        %561 = vmatprep.subr.mxu0 0.0
        %562 = vmatpush1.msra.mxu0 0.0
        %563 = vmatprep.subr.mxu0 0.0
        %564 = vmatpush1.msra.mxu0 0.0
        %565 = vmatprep.subr.mxu0 0.0
        %566 = vmatpush1.msra.mxu0 0.0
        %567 = vmatprep.subr.mxu0 0.0
        %568 = vmatpush1.msra.mxu0 0.0
        %569 = vmatprep.subr.mxu0 0.0
        %570 = vmatpush1.msra.mxu0 0.0
        %571 = vmatprep.subr.mxu0 0.0
        %572 = vmatpush1.msra.mxu0 0.0
        %573 = vmatprep.subr.mxu0 0.0
        %574 = vmatpush1.msra.mxu0 0.0
        %575 = vmatprep.subr.mxu0 0.0
        %576 = vmatpush1.msra.mxu0 0.0
        %577 = vmatprep.subr.mxu0 0.0
        %578 = vmatpush1.msra.mxu0 0.0
        %579 = vmatprep.subr.mxu0 0.0
        %580 = vmatpush1.msra.mxu0 0.0
        %581 = vmatprep.subr.mxu0 0.0
        %582 = vmatpush1.msra.mxu0 0.0
        %583 = vmatprep.subr.mxu0 0.0
        %584 = vmatpush1.msra.mxu0 0.0
        %585 = vmatprep.subr.mxu0 0.0
        %586 = vmatpush1.msra.mxu0 0.0
        %587 = vmatprep.subr.mxu0 0.0
        %588 = vmatpush1.msra.mxu0 0.0
        %589 = vmatprep.mubr.f32.mxu0 0.0
        %590 = vmatmul.mubr.f32.gmra.mrb[0].mxu0 %v523
        %v591 = vpop.f32.mrb[0].mxu0
        %v592 = vadd.f32 0.0, %v591
        %v593 = vpop.f32.mrb[0].mxu0
        %594 = vdwg.mxu0
        %595 = vrot.lane.b32.xlu0 %v297, 96
        %v596 = vpop.permute.xlu0 %595
        %v597 = vsel %vm299, %v596, 0
        %599 = vmatprep.subr.mxu0 0.0
        %600 = vmatpush1.msra.mxu0 %v298
        %601 = vmatprep.subr.mxu0 0.0
        %602 = vmatpush1.msra.mxu0 0.0
        %603 = vmatprep.subr.mxu0 0.0
        %604 = vmatpush1.msra.mxu0 0.0
        %605 = vmatprep.subr.mxu0 0.0
        %606 = vmatpush1.msra.mxu0 0.0
        %607 = vmatprep.subr.mxu0 0.0
        %608 = vmatpush1.msra.mxu0 0.0
        %609 = vmatprep.subr.mxu0 0.0
        %610 = vmatpush1.msra.mxu0 0.0
        %611 = vmatprep.subr.mxu0 0.0
        %612 = vmatpush1.msra.mxu0 0.0
        %613 = vmatprep.subr.mxu0 0.0
        %614 = vmatpush1.msra.mxu0 0.0
        %615 = vmatprep.subr.mxu0 0.0
        %616 = vmatpush1.msra.mxu0 0.0
        %617 = vmatprep.subr.mxu0 0.0
        %618 = vmatpush1.msra.mxu0 0.0
        %619 = vmatprep.subr.mxu0 0.0
        %620 = vmatpush1.msra.mxu0 0.0
        %621 = vmatprep.subr.mxu0 0.0
        %622 = vmatpush1.msra.mxu0 0.0
        %623 = vmatprep.subr.mxu0 0.0
        %624 = vmatpush1.msra.mxu0 0.0
        %625 = vmatprep.subr.mxu0 0.0
        %626 = vmatpush1.msra.mxu0 0.0
        %627 = vmatprep.subr.mxu0 0.0
        %628 = vmatpush1.msra.mxu0 0.0
        %629 = vmatprep.subr.mxu0 0.0
        %630 = vmatpush1.msra.mxu0 0.0
        %631 = vmatprep.subr.mxu0 0.0
        %632 = vmatpush1.msra.mxu0 0.0
        %633 = vmatprep.subr.mxu0 0.0
        %634 = vmatpush1.msra.mxu0 0.0
        %635 = vmatprep.subr.mxu0 0.0
        %636 = vmatpush1.msra.mxu0 0.0
        %637 = vmatprep.subr.mxu0 0.0
        %638 = vmatpush1.msra.mxu0 0.0
        %639 = vmatprep.subr.mxu0 0.0
        %640 = vmatpush1.msra.mxu0 0.0
        %641 = vmatprep.subr.mxu0 0.0
        %642 = vmatpush1.msra.mxu0 0.0
        %643 = vmatprep.subr.mxu0 0.0
        %644 = vmatpush1.msra.mxu0 0.0
        %645 = vmatprep.subr.mxu0 0.0
        %646 = vmatpush1.msra.mxu0 0.0
        %647 = vmatprep.subr.mxu0 0.0
        %648 = vmatpush1.msra.mxu0 0.0
        %649 = vmatprep.subr.mxu0 0.0
        %650 = vmatpush1.msra.mxu0 0.0
        %651 = vmatprep.subr.mxu0 0.0
        %652 = vmatpush1.msra.mxu0 0.0
        %653 = vmatprep.subr.mxu0 0.0
        %654 = vmatpush1.msra.mxu0 0.0
        %655 = vmatprep.subr.mxu0 0.0
        %656 = vmatpush1.msra.mxu0 0.0
        %657 = vmatprep.subr.mxu0 0.0
        %658 = vmatpush1.msra.mxu0 0.0
        %659 = vmatprep.subr.mxu0 0.0
        %660 = vmatpush1.msra.mxu0 0.0
        %661 = vmatprep.subr.mxu0 0.0
        %662 = vmatpush1.msra.mxu0 0.0
        %663 = vmatprep.mubr.f32.mxu0 0.0
        %664 = vmatmul.mubr.f32.gmra.mrb[0].mxu0 %v597
        %v665 = vpop.f32.mrb[0].mxu0
        %v666 = vadd.f32 0.0, %v665
        %v667 = vpop.f32.mrb[0].mxu0
        %668 = vdwg.mxu0
        %669 = vrot.lane.b32.xlu0 %v297, 88
        %v670 = vpop.permute.xlu0 %669
        %v671 = vsel %vm299, %v670, 0
        %673 = vmatprep.subr.mxu0 0.0
        %674 = vmatpush1.msra.mxu0 %v298
        %675 = vmatprep.subr.mxu0 0.0
        %676 = vmatpush1.msra.mxu0 0.0
        %677 = vmatprep.subr.mxu0 0.0
        %678 = vmatpush1.msra.mxu0 0.0
        %679 = vmatprep.subr.mxu0 0.0
        %680 = vmatpush1.msra.mxu0 0.0
        %681 = vmatprep.subr.mxu0 0.0
        %682 = vmatpush1.msra.mxu0 0.0
        %683 = vmatprep.subr.mxu0 0.0
        %684 = vmatpush1.msra.mxu0 0.0
        %685 = vmatprep.subr.mxu0 0.0
        %686 = vmatpush1.msra.mxu0 0.0
        %687 = vmatprep.subr.mxu0 0.0
        %688 = vmatpush1.msra.mxu0 0.0
        %689 = vmatprep.subr.mxu0 0.0
        %690 = vmatpush1.msra.mxu0 0.0
        %691 = vmatprep.subr.mxu0 0.0
        %692 = vmatpush1.msra.mxu0 0.0
        %693 = vmatprep.subr.mxu0 0.0
        %694 = vmatpush1.msra.mxu0 0.0
        %695 = vmatprep.subr.mxu0 0.0
        %696 = vmatpush1.msra.mxu0 0.0
        %697 = vmatprep.subr.mxu0 0.0
        %698 = vmatpush1.msra.mxu0 0.0
        %699 = vmatprep.subr.mxu0 0.0
        %700 = vmatpush1.msra.mxu0 0.0
        %701 = vmatprep.subr.mxu0 0.0
        %702 = vmatpush1.msra.mxu0 0.0
        %703 = vmatprep.subr.mxu0 0.0
        %704 = vmatpush1.msra.mxu0 0.0
        %705 = vmatprep.subr.mxu0 0.0
        %706 = vmatpush1.msra.mxu0 0.0
        %707 = vmatprep.subr.mxu0 0.0
        %708 = vmatpush1.msra.mxu0 0.0
        %709 = vmatprep.subr.mxu0 0.0
        %710 = vmatpush1.msra.mxu0 0.0
        %711 = vmatprep.subr.mxu0 0.0
        %712 = vmatpush1.msra.mxu0 0.0
        %713 = vmatprep.subr.mxu0 0.0
        %714 = vmatpush1.msra.mxu0 0.0
        %715 = vmatprep.subr.mxu0 0.0
        %716 = vmatpush1.msra.mxu0 0.0
        %717 = vmatprep.subr.mxu0 0.0
        %718 = vmatpush1.msra.mxu0 0.0
        %719 = vmatprep.subr.mxu0 0.0
        %720 = vmatpush1.msra.mxu0 0.0
        %721 = vmatprep.subr.mxu0 0.0
        %722 = vmatpush1.msra.mxu0 0.0
        %723 = vmatprep.subr.mxu0 0.0
        %724 = vmatpush1.msra.mxu0 0.0
        %725 = vmatprep.subr.mxu0 0.0
        %726 = vmatpush1.msra.mxu0 0.0
        %727 = vmatprep.subr.mxu0 0.0
        %728 = vmatpush1.msra.mxu0 0.0
        %729 = vmatprep.subr.mxu0 0.0
        %730 = vmatpush1.msra.mxu0 0.0
        %731 = vmatprep.subr.mxu0 0.0
        %732 = vmatpush1.msra.mxu0 0.0
        %733 = vmatprep.subr.mxu0 0.0
        %734 = vmatpush1.msra.mxu0 0.0
        %735 = vmatprep.subr.mxu0 0.0
        %736 = vmatpush1.msra.mxu0 0.0
        %737 = vmatprep.mubr.f32.mxu0 0.0
        %738 = vmatmul.mubr.f32.gmra.mrb[0].mxu0 %v671
        %v739 = vpop.f32.mrb[0].mxu0
        %v740 = vadd.f32 0.0, %v739
        %v741 = vpop.f32.mrb[0].mxu0
        %742 = vdwg.mxu0
        %743 = vrot.lane.b32.xlu0 %v297, 80
        %v744 = vpop.permute.xlu0 %743
        %v745 = vsel %vm299, %v744, 0
        %747 = vmatprep.subr.mxu0 0.0
        %748 = vmatpush1.msra.mxu0 %v298
        %749 = vmatprep.subr.mxu0 0.0
        %750 = vmatpush1.msra.mxu0 0.0
        %751 = vmatprep.subr.mxu0 0.0
        %752 = vmatpush1.msra.mxu0 0.0
        %753 = vmatprep.subr.mxu0 0.0
        %754 = vmatpush1.msra.mxu0 0.0
        %755 = vmatprep.subr.mxu0 0.0
        %756 = vmatpush1.msra.mxu0 0.0
        %757 = vmatprep.subr.mxu0 0.0
        %758 = vmatpush1.msra.mxu0 0.0
        %759 = vmatprep.subr.mxu0 0.0
        %760 = vmatpush1.msra.mxu0 0.0
        %761 = vmatprep.subr.mxu0 0.0
        %762 = vmatpush1.msra.mxu0 0.0
        %763 = vmatprep.subr.mxu0 0.0
        %764 = vmatpush1.msra.mxu0 0.0
        %765 = vmatprep.subr.mxu0 0.0
        %766 = vmatpush1.msra.mxu0 0.0
        %767 = vmatprep.subr.mxu0 0.0
        %768 = vmatpush1.msra.mxu0 0.0
        %769 = vmatprep.subr.mxu0 0.0
        %770 = vmatpush1.msra.mxu0 0.0
        %771 = vmatprep.subr.mxu0 0.0
        %772 = vmatpush1.msra.mxu0 0.0
        %773 = vmatprep.subr.mxu0 0.0
        %774 = vmatpush1.msra.mxu0 0.0
        %775 = vmatprep.subr.mxu0 0.0
        %776 = vmatpush1.msra.mxu0 0.0
        %777 = vmatprep.subr.mxu0 0.0
        %778 = vmatpush1.msra.mxu0 0.0
        %779 = vmatprep.subr.mxu0 0.0
        %780 = vmatpush1.msra.mxu0 0.0
        %781 = vmatprep.subr.mxu0 0.0
        %782 = vmatpush1.msra.mxu0 0.0
        %783 = vmatprep.subr.mxu0 0.0
        %784 = vmatpush1.msra.mxu0 0.0
        %785 = vmatprep.subr.mxu0 0.0
        %786 = vmatpush1.msra.mxu0 0.0
        %787 = vmatprep.subr.mxu0 0.0
        %788 = vmatpush1.msra.mxu0 0.0
        %789 = vmatprep.subr.mxu0 0.0
        %790 = vmatpush1.msra.mxu0 0.0
        %791 = vmatprep.subr.mxu0 0.0
        %792 = vmatpush1.msra.mxu0 0.0
        %793 = vmatprep.subr.mxu0 0.0
        %794 = vmatpush1.msra.mxu0 0.0
        %795 = vmatprep.subr.mxu0 0.0
        %796 = vmatpush1.msra.mxu0 0.0
        %797 = vmatprep.subr.mxu0 0.0
        %798 = vmatpush1.msra.mxu0 0.0
        %799 = vmatprep.subr.mxu0 0.0
        %800 = vmatpush1.msra.mxu0 0.0
        %801 = vmatprep.subr.mxu0 0.0
        %802 = vmatpush1.msra.mxu0 0.0
        %803 = vmatprep.subr.mxu0 0.0
        %804 = vmatpush1.msra.mxu0 0.0
        %805 = vmatprep.subr.mxu0 0.0
        %806 = vmatpush1.msra.mxu0 0.0
        %807 = vmatprep.subr.mxu0 0.0
        %808 = vmatpush1.msra.mxu0 0.0
        %809 = vmatprep.subr.mxu0 0.0
        %810 = vmatpush1.msra.mxu0 0.0
        %811 = vmatprep.mubr.f32.mxu0 0.0
        %812 = vmatmul.mubr.f32.gmra.mrb[0].mxu0 %v745
        %v813 = vpop.f32.mrb[0].mxu0
        %v814 = vadd.f32 0.0, %v813
        %v815 = vpop.f32.mrb[0].mxu0
        %816 = vdwg.mxu0
        %817 = vrot.lane.b32.xlu0 %v297, 72
        %v818 = vpop.permute.xlu0 %817
        %v819 = vsel %vm299, %v818, 0
        %821 = vmatprep.subr.mxu0 0.0
        %822 = vmatpush1.msra.mxu0 %v298
        %823 = vmatprep.subr.mxu0 0.0
        %824 = vmatpush1.msra.mxu0 0.0
        %825 = vmatprep.subr.mxu0 0.0
        %826 = vmatpush1.msra.mxu0 0.0
        %827 = vmatprep.subr.mxu0 0.0
        %828 = vmatpush1.msra.mxu0 0.0
        %829 = vmatprep.subr.mxu0 0.0
        %830 = vmatpush1.msra.mxu0 0.0
        %831 = vmatprep.subr.mxu0 0.0
        %832 = vmatpush1.msra.mxu0 0.0
        %833 = vmatprep.subr.mxu0 0.0
        %834 = vmatpush1.msra.mxu0 0.0
        %835 = vmatprep.subr.mxu0 0.0
        %836 = vmatpush1.msra.mxu0 0.0
        %837 = vmatprep.subr.mxu0 0.0
        %838 = vmatpush1.msra.mxu0 0.0
        %839 = vmatprep.subr.mxu0 0.0
        %840 = vmatpush1.msra.mxu0 0.0
        %841 = vmatprep.subr.mxu0 0.0
        %842 = vmatpush1.msra.mxu0 0.0
        %843 = vmatprep.subr.mxu0 0.0
        %844 = vmatpush1.msra.mxu0 0.0
        %845 = vmatprep.subr.mxu0 0.0
        %846 = vmatpush1.msra.mxu0 0.0
        %847 = vmatprep.subr.mxu0 0.0
        %848 = vmatpush1.msra.mxu0 0.0
        %849 = vmatprep.subr.mxu0 0.0
        %850 = vmatpush1.msra.mxu0 0.0
        %851 = vmatprep.subr.mxu0 0.0
        %852 = vmatpush1.msra.mxu0 0.0
        %853 = vmatprep.subr.mxu0 0.0
        %854 = vmatpush1.msra.mxu0 0.0
        %855 = vmatprep.subr.mxu0 0.0
        %856 = vmatpush1.msra.mxu0 0.0
        %857 = vmatprep.subr.mxu0 0.0
        %858 = vmatpush1.msra.mxu0 0.0
        %859 = vmatprep.subr.mxu0 0.0
        %860 = vmatpush1.msra.mxu0 0.0
        %861 = vmatprep.subr.mxu0 0.0
        %862 = vmatpush1.msra.mxu0 0.0
        %863 = vmatprep.subr.mxu0 0.0
        %864 = vmatpush1.msra.mxu0 0.0
        %865 = vmatprep.subr.mxu0 0.0
        %866 = vmatpush1.msra.mxu0 0.0
        %867 = vmatprep.subr.mxu0 0.0
        %868 = vmatpush1.msra.mxu0 0.0
        %869 = vmatprep.subr.mxu0 0.0
        %870 = vmatpush1.msra.mxu0 0.0
        %871 = vmatprep.subr.mxu0 0.0
        %872 = vmatpush1.msra.mxu0 0.0
        %873 = vmatprep.subr.mxu0 0.0
        %874 = vmatpush1.msra.mxu0 0.0
        %875 = vmatprep.subr.mxu0 0.0
        %876 = vmatpush1.msra.mxu0 0.0
        %877 = vmatprep.subr.mxu0 0.0
        %878 = vmatpush1.msra.mxu0 0.0
        %879 = vmatprep.subr.mxu0 0.0
        %880 = vmatpush1.msra.mxu0 0.0
        %881 = vmatprep.subr.mxu0 0.0
        %882 = vmatpush1.msra.mxu0 0.0
        %883 = vmatprep.subr.mxu0 0.0
        %884 = vmatpush1.msra.mxu0 0.0
        %885 = vmatprep.mubr.f32.mxu0 0.0
        %886 = vmatmul.mubr.f32.gmra.mrb[0].mxu0 %v819
        %v887 = vpop.f32.mrb[0].mxu0
        %v888 = vadd.f32 0.0, %v887
        %v889 = vpop.f32.mrb[0].mxu0
        %890 = vdwg.mxu0
        %892 = vrot.lane.b32.xlu0 %v370, 16
        %v893 = vpop.permute.xlu0 %892
        %896 = vrot.lane.b32.xlu0 %v444, 32
        %v897 = vpop.permute.xlu0 %896
        %899 = vrot.lane.b32.xlu0 %v444, 48
        %v900 = vpop.permute.xlu0 %899
        %903 = vrot.lane.b32.xlu0 %v518, 64
        %v904 = vpop.permute.xlu0 %903
        %906 = vrot.lane.b32.xlu0 %v518, 80
        %v907 = vpop.permute.xlu0 %906
        %910 = vrot.lane.b32.xlu0 %v592, 96
        %v911 = vpop.permute.xlu0 %910
        %913 = vrot.lane.b32.xlu0 %v592, 112
        %v914 = vpop.permute.xlu0 %913
        %917 = vrot.lane.b32.xlu0 %v666, 16
        %v918 = vpop.permute.xlu0 %917
        %921 = vrot.lane.b32.xlu0 %v740, 32
        %v922 = vpop.permute.xlu0 %921
        %924 = vrot.lane.b32.xlu0 %v740, 48
        %v925 = vpop.permute.xlu0 %924
        %928 = vrot.lane.b32.xlu0 %v814, 64
        %v929 = vpop.permute.xlu0 %928
        %931 = vrot.lane.b32.xlu0 %v814, 80
        %v932 = vpop.permute.xlu0 %931
        %935 = vrot.lane.b32.xlu0 %v888, 96
        %v936 = vpop.permute.xlu0 %935
        %938 = vrot.lane.b32.xlu0 %v888, 112
        %v939 = vpop.permute.xlu0 %938
        %vm941 = vcmask 130048
        %v942 = vsel %vm941, %v370, %v893
        %vm943 = vcmask 261120
        %v944 = vsel %vm943, %v942, %v897
        %vm945 = vcmask 392192
        %v946 = vsel %vm945, %v944, %v900
        %vm947 = vcmask 523264
        %v948 = vsel %vm947, %v946, %v904
        %vm949 = vcmask 654336
        %v950 = vsel %vm949, %v948, %v907
        %vm951 = vcmask 785408
        %v952 = vsel %vm951, %v950, %v911
        %vm953 = vcmask 916480
        %v954 = vsel %vm953, %v952, %v914
        %v955 = vsel %vm941, %v666, %v918
        %v956 = vsel %vm943, %v955, %v922
        %v957 = vsel %vm945, %v956, %v925
        %v958 = vsel %vm947, %v957, %v929
        %v959 = vsel %vm949, %v958, %v932
        %v960 = vsel %vm951, %v959, %v936
        %v961 = vsel %vm953, %v960, %v939
        %v962 = vld [vmem:[%s2] sm:$0xff]
        %964 = vset.pattern.permute.xlu0 0
        %965 = vperm.xlu0 %964, %v962
        %v966 = vpop.permute.xlu0 %965
        %v969 = vcombine.high %v296, %v296
        %vm970 = vcmask 31744
        %v972 = vsel %vm970, %v295, 0
        %vm974 = vcmask 1043456
        %v975 = vsel %vm974, %v296, 0
        %v977 = vsel %vm974, %v969, 0
        %979 = vmatprep.subr.mxu0 %v977
        %980 = vmatpush1.msra.mxu0 %v975
        %981 = vmatprep.subr.mxu0 0.0
        %982 = vmatpush1.msra.mxu0 0.0
        %983 = vmatprep.subr.mxu0 0.0
        %984 = vmatpush1.msra.mxu0 0.0
        %985 = vmatprep.subr.mxu0 0.0
        %986 = vmatpush1.msra.mxu0 0.0
        %987 = vmatprep.subr.mxu0 0.0
        %988 = vmatpush1.msra.mxu0 0.0
        %989 = vmatprep.subr.mxu0 0.0
        %990 = vmatpush1.msra.mxu0 0.0
        %991 = vmatprep.subr.mxu0 0.0
        %992 = vmatpush1.msra.mxu0 0.0
        %993 = vmatprep.subr.mxu0 0.0
        %994 = vmatpush1.msra.mxu0 0.0
        %995 = vmatprep.subr.mxu0 0.0
        %996 = vmatpush1.msra.mxu0 0.0
        %997 = vmatprep.subr.mxu0 0.0
        %998 = vmatpush1.msra.mxu0 0.0
        %999 = vmatprep.subr.mxu0 0.0
        %1000 = vmatpush1.msra.mxu0 0.0
        %1001 = vmatprep.subr.mxu0 0.0
        %1002 = vmatpush1.msra.mxu0 0.0
        %1003 = vmatprep.subr.mxu0 0.0
        %1004 = vmatpush1.msra.mxu0 0.0
        %1005 = vmatprep.subr.mxu0 0.0
        %1006 = vmatpush1.msra.mxu0 0.0
        %1007 = vmatprep.subr.mxu0 0.0
        %1008 = vmatpush1.msra.mxu0 0.0
        %1009 = vmatprep.subr.mxu0 0.0
        %1010 = vmatpush1.msra.mxu0 0.0
        %1011 = vmatprep.subr.mxu0 0.0
        %1012 = vmatpush1.msra.mxu0 0.0
        %1013 = vmatprep.subr.mxu0 0.0
        %1014 = vmatpush1.msra.mxu0 0.0
        %1015 = vmatprep.subr.mxu0 0.0
        %1016 = vmatpush1.msra.mxu0 0.0
        %1017 = vmatprep.subr.mxu0 0.0
        %1018 = vmatpush1.msra.mxu0 0.0
        %1019 = vmatprep.subr.mxu0 0.0
        %1020 = vmatpush1.msra.mxu0 0.0
        %1021 = vmatprep.subr.mxu0 0.0
        %1022 = vmatpush1.msra.mxu0 0.0
        %1023 = vmatprep.subr.mxu0 0.0
        %1024 = vmatpush1.msra.mxu0 0.0
        %1025 = vmatprep.subr.mxu0 0.0
        %1026 = vmatpush1.msra.mxu0 0.0
        %1027 = vmatprep.subr.mxu0 0.0
        %1028 = vmatpush1.msra.mxu0 0.0
        %1029 = vmatprep.subr.mxu0 0.0
        %1030 = vmatpush1.msra.mxu0 0.0
        %1031 = vmatprep.subr.mxu0 0.0
        %1032 = vmatpush1.msra.mxu0 0.0
        %1033 = vmatprep.subr.mxu0 0.0
        %1034 = vmatpush1.msra.mxu0 0.0
        %1035 = vmatprep.subr.mxu0 0.0
        %1036 = vmatpush1.msra.mxu0 0.0
        %1037 = vmatprep.subr.mxu0 0.0
        %1038 = vmatpush1.msra.mxu0 0.0
        %1039 = vmatprep.subr.mxu0 0.0
        %1040 = vmatpush1.msra.mxu0 0.0
        %1041 = vmatprep.subr.mxu0 0.0
        %1042 = vmatpush1.msra.mxu0 0.0
        %1043 = vmatprep.mubr.f32.mxu0 0.0
        %1044 = vmatmul.mubr.f32.gmra.mrb[0].mxu0 %v972
        %v1045 = vpop.f32.mrb[0].mxu0
        %v1046 = vadd.f32 %v966, %v1045
        %v1047 = vpop.f32.mrb[0].mxu0
        %v1048 = vadd.f32 %v966, %v1047
        %1049 = vdwg.mxu0
        %v1050 = vadd.f32 %v1046, %v954
        %v1051 = vadd.f32 %v1048, %v961
        %1052 = vst [vmem:[%s276] sm:$0xff] %v1050
        %1053 = vst [vmem:[%s276 + $0x8] sm:$0xff] %v1051
        %s1054 = sand.u32 %s161, 1
        %s1055 = scalar_lea.sflag [#allocation4], %s1054
        %s1056 = sand.u32 %s161, 1
        %s1057 = smul.addr %s1056, 16
        %s1058 = scalar_lea.vmem [#allocation5], %s1057
        // Predicated region
        $region45: #{tpu_custom_call.1} parent=39 // pred_check
          %p1059 = pneg %p171
        $region46: #{tpu_custom_call.1} parent=39 // pred_check_branch
          %1061 = sbr.rel (%p1059) target = $region48
        $region47: #{tpu_custom_call.1} parent=39 // pred_region
          %s1062 = smul.u32 2, %s25
          %s1064 = ssub.s32 256, 256
          %1065 = vsyncadd %s1055, %s1064
          %s1066 = smul.addr %s24, 2
          %s1067 = sadd.s32 %s1062, %s1066
          %s1068 = smul.addr %s1067, 128
          %s1069 = scalar_lea.hbm %s5, %s1068
          %s1071 = sshll.u32 %s1058, 4
          %s1072 = int_to_ptr.vmem [resolvable:$true] %s1071
          %1074 = dma.vmem_to_hbm [thread:$0]  %s1072, 256, %s1069, %s1055
        $region48: #{tpu_custom_call.1} parent=39 // pred_fallthru
          _
      $region40: #{tpu_custom_call.1} parent=5 // pred_fallthru
        _
      %p1075 = scmp.le.s32.totalorder 2, %s15
      // Predicated region
      $region49: #{tpu_custom_call.1} parent=5 // pred_check
        %p1076 = pneg %p1075
      $region50: #{tpu_custom_call.1} parent=5 // pred_check_branch
        %1078 = sbr.rel (%p1076) target = $region52
      $region51: #{tpu_custom_call.1} parent=5 // pred_region
        %s1079 = ssub.s32 %s15, 2
        // Predicated region
        $region53: #{tpu_custom_call.1} parent=51 // pred_check
          %p1080 = pneg %p177
        $region54: #{tpu_custom_call.1} parent=51 // pred_check_branch
          %1082 = sbr.rel (%p1080) target = $region56
        $region55: #{tpu_custom_call.1} parent=51 // pred_region
          %s1083 = sand.u32 %s162, 1
          %s1084 = scalar_lea.sflag [#allocation4], %s1083
          %s1085 = sand.u32 %s162, 1
          %s1086 = smul.addr %s1085, 16
          %s1087 = scalar_lea.vmem [#allocation5], %s1086
          %1088 = dma.done %s1084, 256
        $region56: #{tpu_custom_call.1} parent=51 // pred_fallthru
          _
      $region52: #{tpu_custom_call.1} parent=5 // pred_fallthru
        _
    $region6: #{tpu_custom_call.1} parent=1 // loop_footer
      %s19 = sadd.s32 1, %s15
    $region7: #{tpu_custom_call.1} parent=1 // loop_footer_branch
      %14 = sbr.rel target = $region3
    $region8: #{tpu_custom_call.1} parent=1 // loop_exit
      _
    %1089 = vsyncpa [#allocation3], 1
    %s1090 = scalar_lea.sflag [#allocation3], 1
    %1091 = vsyncpa %s1090, 1
    %1092 = vsyncpa [#allocation4], 1
    %s1093 = scalar_lea.sflag [#allocation4], 1
    %1094 = vsyncpa %s1093, 1

</llo_original>
